<compile_context>
chip_gen: v5e
topology: v5e:2x2
jax: 0.10.0
libtpu: 0.0.40
codegen_flags: <defaults>
</compile_context>

<pallas_src>
import jax
import jax.numpy as jnp
import numpy as np
from jax.experimental import pallas as pl
from jax.experimental.pallas import tpu as pltpu

# Model config (mirrors the PyTorch module __init__)
VOCAB = 64     # vocabulary_size
EMB = 15       # embedding dim
HIDDEN = 10    # LSTM hidden size
OUT = 6        # output_targets

GP = 32        # lanes per gate (4 gates packed into one 128-lane group)
LANES = 4 * GP # 128
B_BLK = 8      # sublane batch block
H_PAD = 128    # lane-padded hidden / fc input rows


def chatbot_kernel(tok_ref, w_eff_ref, w_hh_t_ref, b_ref, w_fc_t_ref,
                   b_fc_ref, out_ref):
    """One batch-block (8 sequences) forward pass, fully resident in VMEM.

    tok_ref   : (T*Bp, 1) int32   -- tokens, time-major within the block
    w_eff_ref : (V, 128) bf16     -- emb @ W_ih.T, gate g at lanes [g*32, g*32+H)
    w_hh_t_ref: (128, 128) bf16   -- W_hh.T, packed gates, zero rows >= H
    b_ref     : (1, 128) f32      -- b_ih + b_hh, gate-packed, zero padding
    w_fc_t_ref: (128, 128) bf16   -- W_fc.T, zero-padded (rows >= H, cols >= OUT)
    b_fc_ref  : (1, 128) f32
    out_ref   : (Bp, 128) f32     -- lane-dense output slab (real data [:B,:OUT])
    """
    TB = tok_ref.shape[0]
    V = w_eff_ref.shape[0]
    Bp = out_ref.shape[0]
    T = TB // Bp

    # ---- Fused (embedding + input projection): one one-hot matmul for all T ----
    onehot = (tok_ref[...] ==
              jax.lax.broadcasted_iota(jnp.int32, (TB, V), 1)).astype(jnp.bfloat16)
    gx = (jnp.dot(onehot, w_eff_ref[...], preferred_element_type=jnp.float32)
          + b_ref[...])                                            # (T*Bp, 128) f32

    # ---- Fully unrolled LSTM recurrence (PyTorch gate order i, f, g, o) ----
    h = jnp.zeros((Bp, LANES), jnp.float32)
    c = jnp.zeros((Bp, LANES), jnp.float32)
    for t in range(T):
        gates = (gx[t * Bp:(t + 1) * Bp, :]
                 + jnp.dot(h.astype(jnp.bfloat16), w_hh_t_ref[...],
                           preferred_element_type=jnp.float32))    # (Bp, 128) f32
        sig = jax.nn.sigmoid(gates)     # i/f/o valid in their lane groups
        th = jnp.tanh(gates)            # g valid in its lane group
        # Realign f/g/o to lanes [0, GP) via XLU rotates (jnp.roll semantics:
        # out[l] = in[(l - shift) mod 128]).
        i_g = sig                                     # i already at lanes [0, GP)
        f_g = pltpu.roll(sig, LANES - GP, axis=1)     # f: lanes [GP, 2GP) -> [0, GP)
        g_g = pltpu.roll(th, LANES - 2 * GP, axis=1)  # g: lanes [2GP,3GP) -> [0, GP)
        o_g = pltpu.roll(sig, LANES - 3 * GP, axis=1) # o: lanes [3GP,4GP) -> [0, GP)
        c = f_g * c + i_g * g_g
        h = o_g * jnp.tanh(c)

    # ---- relu(last hidden) -> fc1 (lane-dense (Bp, 128) store) ----
    h = jnp.maximum(h, 0.0)
    out_ref[...] = (jnp.dot(h.astype(jnp.bfloat16), w_fc_t_ref[...],
                            preferred_element_type=jnp.float32)
                    + b_fc_ref[...])


def _pack_gates(w, hidden, gp):
    """(rows, 4*hidden) -> (rows, 4*gp): gate g placed at cols [g*gp, g*gp+hidden)."""
    rows = w.shape[0]
    out = jnp.zeros((rows, 4 * gp), w.dtype)
    for g in range(4):
        out = out.at[:, g * gp:g * gp + hidden].set(w[:, g * hidden:(g + 1) * hidden])
    return out


def prepare_chatbot_params(emb, w_ih, w_hh, b_ih, b_hh, w_fc, b_fc):
    """Run ONCE per model: fold/pack/pad weights into kernel-ready slabs."""
    emb = emb.astype(jnp.float32)
    w_ih = w_ih.astype(jnp.float32)
    w_hh = w_hh.astype(jnp.float32)
    w_fc = w_fc.astype(jnp.float32)

    # Fold embedding into input projection: (V, 4H) -> gate-packed -> bf16.
    w_eff = _pack_gates(jnp.dot(emb, w_ih.T), HIDDEN, GP).astype(jnp.bfloat16)
    b_sum = _pack_gates((b_ih + b_hh).astype(jnp.float32).reshape(1, 4 * HIDDEN),
                        HIDDEN, GP)                                  # (1, 128) f32

    # Recurrent weight: transposed, gate-packed, row-padded, bf16.
    w_hh_t = jnp.zeros((H_PAD, LANES), jnp.float32)
    w_hh_t = w_hh_t.at[:HIDDEN].set(_pack_gates(w_hh.T, HIDDEN, GP))
    w_hh_t = w_hh_t.astype(jnp.bfloat16)                             # (128, 128)

    # FC weight/bias: transposed + padded to lane-dense slabs.
    w_fc_t = (jnp.zeros((H_PAD, LANES), jnp.float32)
              .at[:HIDDEN, :OUT].set(w_fc.T).astype(jnp.bfloat16))   # (128, 128)
    b_fc_p = jnp.zeros((1, LANES), jnp.float32).at[0, :OUT].set(
        b_fc.astype(jnp.float32))

    return (w_eff, b_sum, w_hh_t, w_fc_t, b_fc_p)


@jax.jit
def chatbot_forward(tokens, prepared):
    """tokens: (B, T) int32; prepared: output of prepare_chatbot_params()."""
    w_eff, b_sum, w_hh_t, w_fc_t, b_fc_p = prepared
    B, T = tokens.shape
    nB = pl.cdiv(B, B_BLK)
    B_pad = nB * B_BLK

    # Tokens: pad batch to a multiple of 8, then per block of 8 rows lay out
    # time-major: (nB, T*B_BLK, 1) flattened to (nB*T*B_BLK, 1).
    tok = jnp.zeros((B_pad, T), jnp.int32).at[:B].set(tokens.astype(jnp.int32))
    tok_flat = tok.reshape(nB, B_BLK, T).transpose(0, 2, 1).reshape(
        nB * T * B_BLK, 1)

    out = pl.pallas_call(
        chatbot_kernel,
        out_shape=jax.ShapeDtypeStruct((B_pad, LANES), jnp.float32),
        grid=(nB,),
        in_specs=[
            pl.BlockSpec((T * B_BLK, 1), lambda b: (b, 0)),   # tokens (per block)
            pl.BlockSpec((VOCAB, LANES), lambda b: (0, 0)),   # W_eff
            pl.BlockSpec((H_PAD, LANES), lambda b: (0, 0)),   # W_hh.T
            pl.BlockSpec((1, LANES), lambda b: (0, 0)),       # b_ih + b_hh
            pl.BlockSpec((H_PAD, LANES), lambda b: (0, 0)),   # W_fc.T
            pl.BlockSpec((1, LANES), lambda b: (0, 0)),       # fc bias
        ],
        out_specs=pl.BlockSpec((B_BLK, LANES), lambda b: (b, 0)),
        compiler_params=pltpu.CompilerParams(
            dimension_semantics=("parallel",)),               # 2 TCs on v7x
    )(tok_flat, w_eff, w_hh_t, b_sum, w_fc_t, b_fc_p)

    return out[:B, :OUT]


def reference_forward(tokens, emb, w_ih, w_hh, b_ih, b_hh, w_fc, b_fc):
    """Pure-JAX reference matching PyTorch semantics (f32)."""
    x = emb[tokens]                      # (B, T, E)
    B, T, _ = x.shape
    H = HIDDEN
    h = jnp.zeros((B, H), jnp.float32)
    c = jnp.zeros((B, H), jnp.float32)
    for t in range(T):
        g = x[:, t] @ w_ih.T + h @ w_hh.T + b_ih + b_hh      # (B, 4H)
        i = jax.nn.sigmoid(g[:, 0:H])
        f = jax.nn.sigmoid(g[:, H:2 * H])
        gg = jnp.tanh(g[:, 2 * H:3 * H])
        o = jax.nn.sigmoid(g[:, 3 * H:4 * H])
        c = f * c + i * gg
        h = o * jnp.tanh(c)
    h = jnp.maximum(h, 0.0)
    return h @ w_fc.T + b_fc


if __name__ == "__main__":
    B, T = 8, 8  # fill the 8-row sublane block (free throughput per review)

    key = jax.random.PRNGKey(0)
    k_emb, k_wih, k_whh, k_bih, k_bhh, k_wfc, k_bfc, k_tok = jax.random.split(key, 8)

    # Deterministic synthetic parameters (shapes from the PyTorch __init__).
    emb = jax.random.normal(k_emb, (VOCAB, EMB), jnp.float32) * 0.1
    w_ih = jax.random.normal(k_wih, (4 * HIDDEN, EMB), jnp.float32) * 0.3
    w_hh = jax.random.normal(k_whh, (4 * HIDDEN, HIDDEN), jnp.float32) * 0.3
    b_ih = jax.random.normal(k_bih, (4 * HIDDEN,), jnp.float32) * 0.1
    b_hh = jax.random.normal(k_bhh, (4 * HIDDEN,), jnp.float32) * 0.1
    w_fc = jax.random.normal(k_wfc, (OUT, HIDDEN), jnp.float32) * 0.3
    b_fc = jax.random.normal(k_bfc, (OUT,), jnp.float32) * 0.1

    tokens = jax.random.randint(k_tok, (B, T), 0, VOCAB, dtype=jnp.int32)

    # Weight prep runs once; the jitted forward reuses the prepared slabs.
    prepared = prepare_chatbot_params(emb, w_ih, w_hh, b_ih, b_hh, w_fc, b_fc)
    prepared = jax.block_until_ready(prepared)

    out = chatbot_forward(tokens, prepared)
    out = jax.block_until_ready(out)
    assert out.shape == (B, OUT) and out.dtype == jnp.float32

    ref = reference_forward(tokens, emb, w_ih, w_hh, b_ih, b_hh, w_fc, b_fc)
    np.testing.assert_allclose(np.asarray(out), np.asarray(ref),
                               rtol=3e-2, atol=3e-2)
    print("KERNEL_OK")
</pallas_src>

<mosaic_0001>
module attributes {stable_mosaic.version = 11 : i64} {
  func.func @chatbot_kernel(%arg0: i32, %arg1: memref<64x1xi32, #tpu.memory_space<vmem>>, %arg2: memref<64x128xbf16, #tpu.memory_space<vmem>>, %arg3: memref<128x128xbf16, #tpu.memory_space<vmem>>, %arg4: memref<1x128xf32, #tpu.memory_space<vmem>>, %arg5: memref<128x128xbf16, #tpu.memory_space<vmem>>, %arg6: memref<1x128xf32, #tpu.memory_space<vmem>>, %arg7: memref<8x128xf32, #tpu.memory_space<vmem>>) attributes {dimension_semantics = [#tpu.dimension_semantics<parallel>], iteration_bounds = array<i64: 1>, scalar_prefetch = 0 : i64, scratch_operands = 0 : i64, tpu.core_type = #tpu.core_type<tc>, window_params = [{transform_indices = @transform_0, window_bounds = array<i64: 64, 1>}, {pipeline_mode = #tpu.pipeline_mode<synchronous>, transform_indices = @transform_1, window_bounds = array<i64: 64, 128>}, {pipeline_mode = #tpu.pipeline_mode<synchronous>, transform_indices = @transform_2, window_bounds = array<i64: 128, 128>}, {pipeline_mode = #tpu.pipeline_mode<synchronous>, transform_indices = @transform_3, window_bounds = array<i64: 1, 128>}, {pipeline_mode = #tpu.pipeline_mode<synchronous>, transform_indices = @transform_4, window_bounds = array<i64: 128, 128>}, {pipeline_mode = #tpu.pipeline_mode<synchronous>, transform_indices = @transform_5, window_bounds = array<i64: 1, 128>}, {transform_indices = @transform_6, window_bounds = array<i64: 8, 128>}]} {
    %c0 = arith.constant 0 : index
    %c0_0 = arith.constant 0 : index
    %0 = vector.load %arg1[%c0, %c0_0] : memref<64x1xi32, #tpu.memory_space<vmem>>, vector<64x1xi32>
    %1 = tpu.iota {dimensions = array<i32: 1>} : vector<64x64xi32>
    %2 = vector.broadcast %0 : vector<64x1xi32> to vector<64x64xi32>
    %3 = arith.cmpi eq, %2, %1 : vector<64x64xi32>
    %4 = arith.extui %3 : vector<64x64xi1> to vector<64x64xi32>
    %5 = arith.sitofp %4 : vector<64x64xi32> to vector<64x64xf32>
    %6 = arith.truncf %5 : vector<64x64xf32> to vector<64x64xbf16>
    %c0_1 = arith.constant 0 : index
    %c0_2 = arith.constant 0 : index
    %7 = vector.load %arg2[%c0_1, %c0_2] : memref<64x128xbf16, #tpu.memory_space<vmem>>, vector<64x128xbf16>
    %cst = arith.constant dense<0.000000e+00> : vector<64x128xf32>
    %8 = tpu.matmul %6, %7, %cst {dimension_numbers = #tpu.dot_dimension_numbers<[1], [0], [0], [1], [0, 0, 1, 1], [], []>} : vector<64x64xbf16>, vector<64x128xbf16>, vector<64x128xf32> -> vector<64x128xf32>
    %c0_3 = arith.constant 0 : index
    %c0_4 = arith.constant 0 : index
    %9 = vector.load %arg4[%c0_3, %c0_4] : memref<1x128xf32, #tpu.memory_space<vmem>>, vector<1x128xf32>
    %10 = vector.broadcast %9 : vector<1x128xf32> to vector<64x128xf32>
    %11 = arith.addf %8, %10 : vector<64x128xf32>
    %cst_5 = arith.constant 0.000000e+00 : f32
    %12 = vector.broadcast %cst_5 : f32 to vector<8x128xf32>
    %cst_6 = arith.constant 0.000000e+00 : f32
    %13 = vector.broadcast %cst_6 : f32 to vector<8x128xf32>
    %14 = vector.extract_strided_slice %11 {offsets = [0, 0], sizes = [8, 128], strides = [1, 1]} : vector<64x128xf32> to vector<8x128xf32>
    %15 = arith.truncf %12 : vector<8x128xf32> to vector<8x128xbf16>
    %c0_7 = arith.constant 0 : index
    %c0_8 = arith.constant 0 : index
    %16 = vector.load %arg3[%c0_7, %c0_8] : memref<128x128xbf16, #tpu.memory_space<vmem>>, vector<128x128xbf16>
    %cst_9 = arith.constant dense<0.000000e+00> : vector<8x128xf32>
    %17 = tpu.matmul %15, %16, %cst_9 {dimension_numbers = #tpu.dot_dimension_numbers<[1], [0], [0], [1], [0, 0, 1, 1], [], []>} : vector<8x128xbf16>, vector<128x128xbf16>, vector<8x128xf32> -> vector<8x128xf32>
    %18 = arith.addf %14, %17 : vector<8x128xf32>
    %19 = arith.negf %18 : vector<8x128xf32>
    %20 = math.exp %19 : vector<8x128xf32>
    %cst_10 = arith.constant 1.000000e+00 : f32
    %21 = vector.broadcast %cst_10 : f32 to vector<8x128xf32>
    %22 = arith.addf %21, %20 : vector<8x128xf32>
    %23 = arith.divf %21, %22 : vector<8x128xf32>
    %24 = math.tanh %18 : vector<8x128xf32>
    %c96_i32 = arith.constant 96 : i32
    %25 = tpu.dynamic_rotate %23 by %c96_i32 dim 1 : vector<8x128xf32>, i32 -> vector<8x128xf32>
    %c64_i32 = arith.constant 64 : i32
    %26 = tpu.dynamic_rotate %24 by %c64_i32 dim 1 : vector<8x128xf32>, i32 -> vector<8x128xf32>
    %c32_i32 = arith.constant 32 : i32
    %27 = tpu.dynamic_rotate %23 by %c32_i32 dim 1 : vector<8x128xf32>, i32 -> vector<8x128xf32>
    %28 = arith.mulf %25, %13 : vector<8x128xf32>
    %29 = arith.mulf %23, %26 : vector<8x128xf32>
    %30 = arith.addf %28, %29 : vector<8x128xf32>
    %31 = math.tanh %30 : vector<8x128xf32>
    %32 = arith.mulf %27, %31 : vector<8x128xf32>
    %33 = vector.extract_strided_slice %11 {offsets = [8, 0], sizes = [8, 128], strides = [1, 1]} : vector<64x128xf32> to vector<8x128xf32>
    %34 = arith.truncf %32 : vector<8x128xf32> to vector<8x128xbf16>
    %c0_11 = arith.constant 0 : index
    %c0_12 = arith.constant 0 : index
    %35 = vector.load %arg3[%c0_11, %c0_12] : memref<128x128xbf16, #tpu.memory_space<vmem>>, vector<128x128xbf16>
    %cst_13 = arith.constant dense<0.000000e+00> : vector<8x128xf32>
    %36 = tpu.matmul %34, %35, %cst_13 {dimension_numbers = #tpu.dot_dimension_numbers<[1], [0], [0], [1], [0, 0, 1, 1], [], []>} : vector<8x128xbf16>, vector<128x128xbf16>, vector<8x128xf32> -> vector<8x128xf32>
    %37 = arith.addf %33, %36 : vector<8x128xf32>
    %38 = arith.negf %37 : vector<8x128xf32>
    %39 = math.exp %38 : vector<8x128xf32>
    %cst_14 = arith.constant 1.000000e+00 : f32
    %40 = vector.broadcast %cst_14 : f32 to vector<8x128xf32>
    %41 = arith.addf %40, %39 : vector<8x128xf32>
    %42 = arith.divf %40, %41 : vector<8x128xf32>
    %43 = math.tanh %37 : vector<8x128xf32>
    %c96_i32_15 = arith.constant 96 : i32
    %44 = tpu.dynamic_rotate %42 by %c96_i32_15 dim 1 : vector<8x128xf32>, i32 -> vector<8x128xf32>
    %c64_i32_16 = arith.constant 64 : i32
    %45 = tpu.dynamic_rotate %43 by %c64_i32_16 dim 1 : vector<8x128xf32>, i32 -> vector<8x128xf32>
    %c32_i32_17 = arith.constant 32 : i32
    %46 = tpu.dynamic_rotate %42 by %c32_i32_17 dim 1 : vector<8x128xf32>, i32 -> vector<8x128xf32>
    %47 = arith.mulf %44, %30 : vector<8x128xf32>
    %48 = arith.mulf %42, %45 : vector<8x128xf32>
    %49 = arith.addf %47, %48 : vector<8x128xf32>
    %50 = math.tanh %49 : vector<8x128xf32>
    %51 = arith.mulf %46, %50 : vector<8x128xf32>
    %52 = vector.extract_strided_slice %11 {offsets = [16, 0], sizes = [8, 128], strides = [1, 1]} : vector<64x128xf32> to vector<8x128xf32>
    %53 = arith.truncf %51 : vector<8x128xf32> to vector<8x128xbf16>
    %c0_18 = arith.constant 0 : index
    %c0_19 = arith.constant 0 : index
    %54 = vector.load %arg3[%c0_18, %c0_19] : memref<128x128xbf16, #tpu.memory_space<vmem>>, vector<128x128xbf16>
    %cst_20 = arith.constant dense<0.000000e+00> : vector<8x128xf32>
    %55 = tpu.matmul %53, %54, %cst_20 {dimension_numbers = #tpu.dot_dimension_numbers<[1], [0], [0], [1], [0, 0, 1, 1], [], []>} : vector<8x128xbf16>, vector<128x128xbf16>, vector<8x128xf32> -> vector<8x128xf32>
    %56 = arith.addf %52, %55 : vector<8x128xf32>
    %57 = arith.negf %56 : vector<8x128xf32>
    %58 = math.exp %57 : vector<8x128xf32>
    %cst_21 = arith.constant 1.000000e+00 : f32
    %59 = vector.broadcast %cst_21 : f32 to vector<8x128xf32>
    %60 = arith.addf %59, %58 : vector<8x128xf32>
    %61 = arith.divf %59, %60 : vector<8x128xf32>
    %62 = math.tanh %56 : vector<8x128xf32>
    %c96_i32_22 = arith.constant 96 : i32
    %63 = tpu.dynamic_rotate %61 by %c96_i32_22 dim 1 : vector<8x128xf32>, i32 -> vector<8x128xf32>
    %c64_i32_23 = arith.constant 64 : i32
    %64 = tpu.dynamic_rotate %62 by %c64_i32_23 dim 1 : vector<8x128xf32>, i32 -> vector<8x128xf32>
    %c32_i32_24 = arith.constant 32 : i32
    %65 = tpu.dynamic_rotate %61 by %c32_i32_24 dim 1 : vector<8x128xf32>, i32 -> vector<8x128xf32>
    %66 = arith.mulf %63, %49 : vector<8x128xf32>
    %67 = arith.mulf %61, %64 : vector<8x128xf32>
    %68 = arith.addf %66, %67 : vector<8x128xf32>
    %69 = math.tanh %68 : vector<8x128xf32>
    %70 = arith.mulf %65, %69 : vector<8x128xf32>
    %71 = vector.extract_strided_slice %11 {offsets = [24, 0], sizes = [8, 128], strides = [1, 1]} : vector<64x128xf32> to vector<8x128xf32>
    %72 = arith.truncf %70 : vector<8x128xf32> to vector<8x128xbf16>
    %c0_25 = arith.constant 0 : index
    %c0_26 = arith.constant 0 : index
    %73 = vector.load %arg3[%c0_25, %c0_26] : memref<128x128xbf16, #tpu.memory_space<vmem>>, vector<128x128xbf16>
    %cst_27 = arith.constant dense<0.000000e+00> : vector<8x128xf32>
    %74 = tpu.matmul %72, %73, %cst_27 {dimension_numbers = #tpu.dot_dimension_numbers<[1], [0], [0], [1], [0, 0, 1, 1], [], []>} : vector<8x128xbf16>, vector<128x128xbf16>, vector<8x128xf32> -> vector<8x128xf32>
    %75 = arith.addf %71, %74 : vector<8x128xf32>
    %76 = arith.negf %75 : vector<8x128xf32>
    %77 = math.exp %76 : vector<8x128xf32>
    %cst_28 = arith.constant 1.000000e+00 : f32
    %78 = vector.broadcast %cst_28 : f32 to vector<8x128xf32>
    %79 = arith.addf %78, %77 : vector<8x128xf32>
    %80 = arith.divf %78, %79 : vector<8x128xf32>
    %81 = math.tanh %75 : vector<8x128xf32>
    %c96_i32_29 = arith.constant 96 : i32
    %82 = tpu.dynamic_rotate %80 by %c96_i32_29 dim 1 : vector<8x128xf32>, i32 -> vector<8x128xf32>
    %c64_i32_30 = arith.constant 64 : i32
    %83 = tpu.dynamic_rotate %81 by %c64_i32_30 dim 1 : vector<8x128xf32>, i32 -> vector<8x128xf32>
    %c32_i32_31 = arith.constant 32 : i32
    %84 = tpu.dynamic_rotate %80 by %c32_i32_31 dim 1 : vector<8x128xf32>, i32 -> vector<8x128xf32>
    %85 = arith.mulf %82, %68 : vector<8x128xf32>
    %86 = arith.mulf %80, %83 : vector<8x128xf32>
    %87 = arith.addf %85, %86 : vector<8x128xf32>
    %88 = math.tanh %87 : vector<8x128xf32>
    %89 = arith.mulf %84, %88 : vector<8x128xf32>
    %90 = vector.extract_strided_slice %11 {offsets = [32, 0], sizes = [8, 128], strides = [1, 1]} : vector<64x128xf32> to vector<8x128xf32>
    %91 = arith.truncf %89 : vector<8x128xf32> to vector<8x128xbf16>
    %c0_32 = arith.constant 0 : index
    %c0_33 = arith.constant 0 : index
    %92 = vector.load %arg3[%c0_32, %c0_33] : memref<128x128xbf16, #tpu.memory_space<vmem>>, vector<128x128xbf16>
    %cst_34 = arith.constant dense<0.000000e+00> : vector<8x128xf32>
    %93 = tpu.matmul %91, %92, %cst_34 {dimension_numbers = #tpu.dot_dimension_numbers<[1], [0], [0], [1], [0, 0, 1, 1], [], []>} : vector<8x128xbf16>, vector<128x128xbf16>, vector<8x128xf32> -> vector<8x128xf32>
    %94 = arith.addf %90, %93 : vector<8x128xf32>
    %95 = arith.negf %94 : vector<8x128xf32>
    %96 = math.exp %95 : vector<8x128xf32>
    %cst_35 = arith.constant 1.000000e+00 : f32
    %97 = vector.broadcast %cst_35 : f32 to vector<8x128xf32>
    %98 = arith.addf %97, %96 : vector<8x128xf32>
    %99 = arith.divf %97, %98 : vector<8x128xf32>
    %100 = math.tanh %94 : vector<8x128xf32>
    %c96_i32_36 = arith.constant 96 : i32
    %101 = tpu.dynamic_rotate %99 by %c96_i32_36 dim 1 : vector<8x128xf32>, i32 -> vector<8x128xf32>
    %c64_i32_37 = arith.constant 64 : i32
    %102 = tpu.dynamic_rotate %100 by %c64_i32_37 dim 1 : vector<8x128xf32>, i32 -> vector<8x128xf32>
    %c32_i32_38 = arith.constant 32 : i32
    %103 = tpu.dynamic_rotate %99 by %c32_i32_38 dim 1 : vector<8x128xf32>, i32 -> vector<8x128xf32>
    %104 = arith.mulf %101, %87 : vector<8x128xf32>
    %105 = arith.mulf %99, %102 : vector<8x128xf32>
    %106 = arith.addf %104, %105 : vector<8x128xf32>
    %107 = math.tanh %106 : vector<8x128xf32>
    %108 = arith.mulf %103, %107 : vector<8x128xf32>
    %109 = vector.extract_strided_slice %11 {offsets = [40, 0], sizes = [8, 128], strides = [1, 1]} : vector<64x128xf32> to vector<8x128xf32>
    %110 = arith.truncf %108 : vector<8x128xf32> to vector<8x128xbf16>
    %c0_39 = arith.constant 0 : index
    %c0_40 = arith.constant 0 : index
    %111 = vector.load %arg3[%c0_39, %c0_40] : memref<128x128xbf16, #tpu.memory_space<vmem>>, vector<128x128xbf16>
    %cst_41 = arith.constant dense<0.000000e+00> : vector<8x128xf32>
    %112 = tpu.matmul %110, %111, %cst_41 {dimension_numbers = #tpu.dot_dimension_numbers<[1], [0], [0], [1], [0, 0, 1, 1], [], []>} : vector<8x128xbf16>, vector<128x128xbf16>, vector<8x128xf32> -> vector<8x128xf32>
    %113 = arith.addf %109, %112 : vector<8x128xf32>
    %114 = arith.negf %113 : vector<8x128xf32>
    %115 = math.exp %114 : vector<8x128xf32>
    %cst_42 = arith.constant 1.000000e+00 : f32
    %116 = vector.broadcast %cst_42 : f32 to vector<8x128xf32>
    %117 = arith.addf %116, %115 : vector<8x128xf32>
    %118 = arith.divf %116, %117 : vector<8x128xf32>
    %119 = math.tanh %113 : vector<8x128xf32>
    %c96_i32_43 = arith.constant 96 : i32
    %120 = tpu.dynamic_rotate %118 by %c96_i32_43 dim 1 : vector<8x128xf32>, i32 -> vector<8x128xf32>
    %c64_i32_44 = arith.constant 64 : i32
    %121 = tpu.dynamic_rotate %119 by %c64_i32_44 dim 1 : vector<8x128xf32>, i32 -> vector<8x128xf32>
    %c32_i32_45 = arith.constant 32 : i32
    %122 = tpu.dynamic_rotate %118 by %c32_i32_45 dim 1 : vector<8x128xf32>, i32 -> vector<8x128xf32>
    %123 = arith.mulf %120, %106 : vector<8x128xf32>
    %124 = arith.mulf %118, %121 : vector<8x128xf32>
    %125 = arith.addf %123, %124 : vector<8x128xf32>
    %126 = math.tanh %125 : vector<8x128xf32>
    %127 = arith.mulf %122, %126 : vector<8x128xf32>
    %128 = vector.extract_strided_slice %11 {offsets = [48, 0], sizes = [8, 128], strides = [1, 1]} : vector<64x128xf32> to vector<8x128xf32>
    %129 = arith.truncf %127 : vector<8x128xf32> to vector<8x128xbf16>
    %c0_46 = arith.constant 0 : index
    %c0_47 = arith.constant 0 : index
    %130 = vector.load %arg3[%c0_46, %c0_47] : memref<128x128xbf16, #tpu.memory_space<vmem>>, vector<128x128xbf16>
    %cst_48 = arith.constant dense<0.000000e+00> : vector<8x128xf32>
    %131 = tpu.matmul %129, %130, %cst_48 {dimension_numbers = #tpu.dot_dimension_numbers<[1], [0], [0], [1], [0, 0, 1, 1], [], []>} : vector<8x128xbf16>, vector<128x128xbf16>, vector<8x128xf32> -> vector<8x128xf32>
    %132 = arith.addf %128, %131 : vector<8x128xf32>
    %133 = arith.negf %132 : vector<8x128xf32>
    %134 = math.exp %133 : vector<8x128xf32>
    %cst_49 = arith.constant 1.000000e+00 : f32
    %135 = vector.broadcast %cst_49 : f32 to vector<8x128xf32>
    %136 = arith.addf %135, %134 : vector<8x128xf32>
    %137 = arith.divf %135, %136 : vector<8x128xf32>
    %138 = math.tanh %132 : vector<8x128xf32>
    %c96_i32_50 = arith.constant 96 : i32
    %139 = tpu.dynamic_rotate %137 by %c96_i32_50 dim 1 : vector<8x128xf32>, i32 -> vector<8x128xf32>
    %c64_i32_51 = arith.constant 64 : i32
    %140 = tpu.dynamic_rotate %138 by %c64_i32_51 dim 1 : vector<8x128xf32>, i32 -> vector<8x128xf32>
    %c32_i32_52 = arith.constant 32 : i32
    %141 = tpu.dynamic_rotate %137 by %c32_i32_52 dim 1 : vector<8x128xf32>, i32 -> vector<8x128xf32>
    %142 = arith.mulf %139, %125 : vector<8x128xf32>
    %143 = arith.mulf %137, %140 : vector<8x128xf32>
    %144 = arith.addf %142, %143 : vector<8x128xf32>
    %145 = math.tanh %144 : vector<8x128xf32>
    %146 = arith.mulf %141, %145 : vector<8x128xf32>
    %147 = vector.extract_strided_slice %11 {offsets = [56, 0], sizes = [8, 128], strides = [1, 1]} : vector<64x128xf32> to vector<8x128xf32>
    %148 = arith.truncf %146 : vector<8x128xf32> to vector<8x128xbf16>
    %c0_53 = arith.constant 0 : index
    %c0_54 = arith.constant 0 : index
    %149 = vector.load %arg3[%c0_53, %c0_54] : memref<128x128xbf16, #tpu.memory_space<vmem>>, vector<128x128xbf16>
    %cst_55 = arith.constant dense<0.000000e+00> : vector<8x128xf32>
    %150 = tpu.matmul %148, %149, %cst_55 {dimension_numbers = #tpu.dot_dimension_numbers<[1], [0], [0], [1], [0, 0, 1, 1], [], []>} : vector<8x128xbf16>, vector<128x128xbf16>, vector<8x128xf32> -> vector<8x128xf32>
    %151 = arith.addf %147, %150 : vector<8x128xf32>
    %152 = arith.negf %151 : vector<8x128xf32>
    %153 = math.exp %152 : vector<8x128xf32>
    %cst_56 = arith.constant 1.000000e+00 : f32
    %154 = vector.broadcast %cst_56 : f32 to vector<8x128xf32>
    %155 = arith.addf %154, %153 : vector<8x128xf32>
    %156 = arith.divf %154, %155 : vector<8x128xf32>
    %157 = math.tanh %151 : vector<8x128xf32>
    %c96_i32_57 = arith.constant 96 : i32
    %158 = tpu.dynamic_rotate %156 by %c96_i32_57 dim 1 : vector<8x128xf32>, i32 -> vector<8x128xf32>
    %c64_i32_58 = arith.constant 64 : i32
    %159 = tpu.dynamic_rotate %157 by %c64_i32_58 dim 1 : vector<8x128xf32>, i32 -> vector<8x128xf32>
    %c32_i32_59 = arith.constant 32 : i32
    %160 = tpu.dynamic_rotate %156 by %c32_i32_59 dim 1 : vector<8x128xf32>, i32 -> vector<8x128xf32>
    %161 = arith.mulf %158, %144 : vector<8x128xf32>
    %162 = arith.mulf %156, %159 : vector<8x128xf32>
    %163 = arith.addf %161, %162 : vector<8x128xf32>
    %164 = math.tanh %163 : vector<8x128xf32>
    %165 = arith.mulf %160, %164 : vector<8x128xf32>
    %cst_60 = arith.constant 0.000000e+00 : f32
    %166 = vector.broadcast %cst_60 : f32 to vector<8x128xf32>
    %167 = arith.maximumf %165, %166 : vector<8x128xf32>
    %168 = arith.truncf %167 : vector<8x128xf32> to vector<8x128xbf16>
    %c0_61 = arith.constant 0 : index
    %c0_62 = arith.constant 0 : index
    %169 = vector.load %arg5[%c0_61, %c0_62] : memref<128x128xbf16, #tpu.memory_space<vmem>>, vector<128x128xbf16>
    %cst_63 = arith.constant dense<0.000000e+00> : vector<8x128xf32>
    %170 = tpu.matmul %168, %169, %cst_63 {dimension_numbers = #tpu.dot_dimension_numbers<[1], [0], [0], [1], [0, 0, 1, 1], [], []>} : vector<8x128xbf16>, vector<128x128xbf16>, vector<8x128xf32> -> vector<8x128xf32>
    %c0_64 = arith.constant 0 : index
    %c0_65 = arith.constant 0 : index
    %171 = vector.load %arg6[%c0_64, %c0_65] : memref<1x128xf32, #tpu.memory_space<vmem>>, vector<1x128xf32>
    %172 = vector.broadcast %171 : vector<1x128xf32> to vector<8x128xf32>
    %173 = arith.addf %170, %172 : vector<8x128xf32>
    %c0_66 = arith.constant 0 : index
    %c0_67 = arith.constant 0 : index
    %174 = vector.load %arg7[%c0_66, %c0_67] : memref<8x128xf32, #tpu.memory_space<vmem>>, vector<8x128xf32>
    tpu.vector_store %arg7[%c0_66, %c0_67], %173 {strides = array<i32>} : memref<8x128xf32, #tpu.memory_space<vmem>>, vector<8x128xf32>,
    return
  }
  func.func @transform_0(%arg0: i32) -> (i32, i32) {
    %c0_i32 = arith.constant 0 : i32
    %c0_i32_0 = arith.constant 0 : i32
    return %arg0, %c0_i32 : i32, i32
  }
  func.func @transform_1(%arg0: i32) -> (i32, i32) {
    %c0_i32 = arith.constant 0 : i32
    %c0_i32_0 = arith.constant 0 : i32
    %c0_i32_1 = arith.constant 0 : i32
    return %c0_i32, %c0_i32_0 : i32, i32
  }
  func.func @transform_2(%arg0: i32) -> (i32, i32) {
    %c0_i32 = arith.constant 0 : i32
    %c0_i32_0 = arith.constant 0 : i32
    %c0_i32_1 = arith.constant 0 : i32
    return %c0_i32, %c0_i32_0 : i32, i32
  }
  func.func @transform_3(%arg0: i32) -> (i32, i32) {
    %c0_i32 = arith.constant 0 : i32
    %c0_i32_0 = arith.constant 0 : i32
    %c0_i32_1 = arith.constant 0 : i32
    return %c0_i32, %c0_i32_0 : i32, i32
  }
  func.func @transform_4(%arg0: i32) -> (i32, i32) {
    %c0_i32 = arith.constant 0 : i32
    %c0_i32_0 = arith.constant 0 : i32
    %c0_i32_1 = arith.constant 0 : i32
    return %c0_i32, %c0_i32_0 : i32, i32
  }
  func.func @transform_5(%arg0: i32) -> (i32, i32) {
    %c0_i32 = arith.constant 0 : i32
    %c0_i32_0 = arith.constant 0 : i32
    %c0_i32_1 = arith.constant 0 : i32
    return %c0_i32, %c0_i32_0 : i32, i32
  }
  func.func @transform_6(%arg0: i32) -> (i32, i32) {
    %c0_i32 = arith.constant 0 : i32
    %c0_i32_0 = arith.constant 0 : i32
    return %arg0, %c0_i32 : i32, i32
  }
}

</mosaic_0001>

<llo_original>
// kernel: chatbot_forward.1
$region0: #{chatbot_forward.1}
  #allocation0 [shape = 'u32[]', space=smem, size = 0x4, offset = 0x4, fixed_abs, tag = 'smem constant byte address 0x4 - core index']
  #allocation1 [shape = 'u32[72,128]{1,0:T(1,128)}', space=vmem, size = 0x9000, scoped, tag = 'internal scratch']
  %s0 = inlined_call_operand.vmem [shape: s32[64,1], index: 0, kind: input, shape index: {}]
  %s1 = inlined_call_operand.hbm [shape: bf16[64,128], index: 1, kind: input, shape index: {}]
  %s2 = inlined_call_operand.vmem [shape: bf16[128,128], index: 2, kind: input, shape index: {}]
  %s3 = inlined_call_operand.vmem [shape: f32[1,128], index: 3, kind: input, shape index: {}]
  %s4 = inlined_call_operand.hbm [shape: bf16[128,128], index: 4, kind: input, shape index: {}]
  %s5 = inlined_call_operand.vmem [shape: f32[1,128], index: 5, kind: input, shape index: {}]
  %s6 = inlined_call_operand.hbm [shape: f32[8,128], index: 6, kind: output, shape index: {}]
  %s7 = sld [smem:[#allocation0]]
  $region42: #{chatbot_forward.1} parent=0
    _
  %s9 = ssub.s32 1, %s7
  %s10 = scalar_select 0, %s9, %s7
  $region1: #{chatbot_forward.1} parent=0
    #allocation2 [shape = 'u8[16384]{0}', space=vmem, size = 0x4000, scoped, tag = 'input window, operand 1, single buffered']
    #allocation3 [shape = 's32[1]{0}', space=sflag, size = 0x4, scoped, tag = 'scoped memory for chatbot_forward.1']
    #allocation4 [shape = 's32[1]{0}', space=sflag, size = 0x4, scoped, tag = 'scoped memory for chatbot_forward.1']
    #allocation5 [shape = 'u8[32768]{0}', space=vmem, size = 0x8000, scoped, tag = 'input window, operand 4, single buffered']
    #allocation6 [shape = 's32[1]{0}', space=sflag, size = 0x4, scoped, tag = 'scoped memory for chatbot_forward.1']
    #allocation7 [shape = 'u8[4096]{0}', space=vmem, size = 0x1000, scoped, tag = 'output window, operand 0, single buffered']
    %11 = vsyncpa [#allocation3], 0
    %12 = vsyncpa [#allocation6], 0
    %13 = vsyncpa [#allocation4], 0
    // Predicated region
    $region2: #{chatbot_forward.1} parent=1 // pred_check
      _
    $region3: #{chatbot_forward.1} parent=1 // pred_check_branch
      %15 = sbr.rel (0) target = $region5
    $region4: #{chatbot_forward.1} parent=1 // pred_region
      _
    $region5: #{chatbot_forward.1} parent=1 // pred_fallthru
      _
    // Predicated region
    $region6: #{chatbot_forward.1} parent=1 // pred_check
      _
    $region7: #{chatbot_forward.1} parent=1 // pred_check_branch
      %17 = sbr.rel (0) target = $region9
    $region8: #{chatbot_forward.1} parent=1 // pred_region
      %19 = vsyncadd [#allocation3], 0
      %s20 = sshll.u32 %s1, 4
      %s21 = int_to_ptr.hbm [resolvable:$true] %s20
      %s22 = sshll.u32 [#allocation2], 4
      %s23 = int_to_ptr.vmem [resolvable:$true] %s22
      %28 = dma.hbm_to_vmem [thread:$0]  %s21, 512, %s23, [#allocation3], 64, 64, 4
    $region9: #{chatbot_forward.1} parent=1 // pred_fallthru
      _
    // Predicated region
    $region10: #{chatbot_forward.1} parent=1 // pred_check
      _
    $region11: #{chatbot_forward.1} parent=1 // pred_check_branch
      %30 = sbr.rel (0) target = $region13
    $region12: #{chatbot_forward.1} parent=1 // pred_region
      _
    $region13: #{chatbot_forward.1} parent=1 // pred_fallthru
      _
    // Predicated region
    $region14: #{chatbot_forward.1} parent=1 // pred_check
      _
    $region15: #{chatbot_forward.1} parent=1 // pred_check_branch
      %32 = sbr.rel (0) target = $region17
    $region16: #{chatbot_forward.1} parent=1 // pred_region
      _
    $region17: #{chatbot_forward.1} parent=1 // pred_fallthru
      _
    // Predicated region
    $region18: #{chatbot_forward.1} parent=1 // pred_check
      _
    $region19: #{chatbot_forward.1} parent=1 // pred_check_branch
      %34 = sbr.rel (0) target = $region21
    $region20: #{chatbot_forward.1} parent=1 // pred_region
      %36 = vsyncadd [#allocation6], 0
      %s37 = sshll.u32 %s4, 4
      %s38 = int_to_ptr.hbm [resolvable:$true] %s37
      %s39 = sshll.u32 [#allocation5], 4
      %s40 = int_to_ptr.vmem [resolvable:$true] %s39
      %45 = dma.hbm_to_vmem [thread:$0]  %s38, 1024, %s40, [#allocation6], 64, 64, 4
    $region21: #{chatbot_forward.1} parent=1 // pred_fallthru
      _
    // Predicated region
    $region22: #{chatbot_forward.1} parent=1 // pred_check
      _
    $region23: #{chatbot_forward.1} parent=1 // pred_check_branch
      %47 = sbr.rel (0) target = $region25
    $region24: #{chatbot_forward.1} parent=1 // pred_region
      _
    $region25: #{chatbot_forward.1} parent=1 // pred_fallthru
      _
    // Predicated region
    $region26: #{chatbot_forward.1} parent=1 // pred_check
      _
    $region27: #{chatbot_forward.1} parent=1 // pred_check_branch
      %49 = sbr.rel (0) target = $region29
    $region28: #{chatbot_forward.1} parent=1 // pred_region
      %51 = dma.done [#allocation3], 512
    $region29: #{chatbot_forward.1} parent=1 // pred_fallthru
      _
    // Predicated region
    $region30: #{chatbot_forward.1} parent=1 // pred_check
      _
    $region31: #{chatbot_forward.1} parent=1 // pred_check_branch
      %53 = sbr.rel (0) target = $region33
    $region32: #{chatbot_forward.1} parent=1 // pred_region
      %55 = dma.done [#allocation6], 1024
    $region33: #{chatbot_forward.1} parent=1 // pred_fallthru
      _
    %v57 = vld [vmem:[%s0] sm:$0xff]
    %v58 = vld [vmem:[%s0 + $0x8] sm:$0xff]
    %v59 = vld [vmem:[%s0 + $0x10] sm:$0xff]
    %v60 = vld [vmem:[%s0 + $0x18] sm:$0xff]
    %v61 = vld [vmem:[%s0 + $0x20] sm:$0xff]
    %v62 = vld [vmem:[%s0 + $0x28] sm:$0xff]
    %v63 = vld [vmem:[%s0 + $0x30] sm:$0xff]
    %v64 = vld [vmem:[%s0 + $0x38] sm:$0xff]
    %v65 = vlaneseq
    %v66 = vand.u32 %v65, 127
    %67 = vset.pattern.permute.xlu0 0
    %68 = vperm.xlu0 %67, %v57
    %v69 = vpop.permute.xlu0 %68
    %70 = vset.pattern.permute.xlu0 0
    %71 = vperm.xlu0 %70, %v58
    %v72 = vpop.permute.xlu0 %71
    %73 = vset.pattern.permute.xlu0 0
    %74 = vperm.xlu0 %73, %v59
    %v75 = vpop.permute.xlu0 %74
    %76 = vset.pattern.permute.xlu0 0
    %77 = vperm.xlu0 %76, %v60
    %v78 = vpop.permute.xlu0 %77
    %79 = vset.pattern.permute.xlu0 0
    %80 = vperm.xlu0 %79, %v61
    %v81 = vpop.permute.xlu0 %80
    %82 = vset.pattern.permute.xlu0 0
    %83 = vperm.xlu0 %82, %v62
    %v84 = vpop.permute.xlu0 %83
    %85 = vset.pattern.permute.xlu0 0
    %86 = vperm.xlu0 %85, %v63
    %v87 = vpop.permute.xlu0 %86
    %88 = vset.pattern.permute.xlu0 0
    %89 = vperm.xlu0 %88, %v64
    %v90 = vpop.permute.xlu0 %89
    %vm91 = vcmp.eq.s32.totalorder %v69, %v66
    %vm92 = vcmp.eq.s32.totalorder %v72, %v66
    %vm93 = vcmp.eq.s32.totalorder %v75, %v66
    %vm94 = vcmp.eq.s32.totalorder %v78, %v66
    %vm95 = vcmp.eq.s32.totalorder %v81, %v66
    %vm96 = vcmp.eq.s32.totalorder %v84, %v66
    %vm97 = vcmp.eq.s32.totalorder %v87, %v66
    %vm98 = vcmp.eq.s32.totalorder %v90, %v66
    %v99 = vsel %vm91, 1, 0
    %v100 = vsel %vm92, 1, 0
    %v101 = vsel %vm93, 1, 0
    %v102 = vsel %vm94, 1, 0
    %v103 = vsel %vm95, 1, 0
    %v104 = vsel %vm96, 1, 0
    %v105 = vsel %vm97, 1, 0
    %v106 = vsel %vm98, 1, 0
    %v107 = vcvt.s32.f32 %v99
    %v108 = vcvt.s32.f32 %v100
    %v109 = vcvt.s32.f32 %v101
    %v110 = vcvt.s32.f32 %v102
    %v111 = vcvt.s32.f32 %v103
    %v112 = vcvt.s32.f32 %v104
    %v113 = vcvt.s32.f32 %v105
    %v114 = vcvt.s32.f32 %v106
    %v115 = vpack.c.bf16 %v108, %v107
    %v116 = vpack.c.bf16 %v110, %v109
    %v117 = vpack.c.bf16 %v112, %v111
    %v118 = vpack.c.bf16 %v114, %v113
    %v119 = vld [vmem:[#allocation2] sm:$0xf]
    %v120 = vld [vmem:[#allocation2 + $0x4] sm:$0xf]
    %v121 = vld [vmem:[#allocation2 + $0x8] sm:$0xf]
    %v122 = vld [vmem:[#allocation2 + $0xc] sm:$0xf]
    %v123 = vld [vmem:[#allocation2 + $0x10] sm:$0xf]
    %v124 = vld [vmem:[#allocation2 + $0x14] sm:$0xf]
    %v125 = vld [vmem:[#allocation2 + $0x18] sm:$0xf]
    %v126 = vld [vmem:[#allocation2 + $0x1c] sm:$0xf]
    %v127 = vld [vmem:[%s3] sm:$0x1]
    %v129 = vperm.slane %v127, 0
    %v139 = vunpack.c.l.b16 %v119
    %v140 = vunpack.c.l.b16 %v120
    %v141 = vunpack.c.l.b16 %v121
    %v142 = vunpack.c.l.b16 %v122
    %v143 = vunpack.c.l.b16 %v123
    %v144 = vunpack.c.l.b16 %v124
    %v145 = vunpack.c.l.b16 %v125
    %v146 = vunpack.c.l.b16 %v126
    %v147 = vpack.c.b16 %v140, %v139
    %v148 = vpack.c.b16 %v142, %v141
    %v149 = vpack.c.b16 %v144, %v143
    %v150 = vpack.c.b16 %v146, %v145
    %vm155 = vcmask 523264
    %v157 = vsel %vm155, %v115, 0
    %v160 = vsel %vm155, %v116, 0
    %v163 = vsel %vm155, %v117, 0
    %v166 = vsel %vm155, %v118, 0
    %168 = vmatpush.bf16.msra.mxu0 0
    %169 = vmatpush.bf16.msra.mxu0 0
    %170 = vmatpush.bf16.msra.mxu0 0
    %171 = vmatpush.bf16.msra.mxu0 0
    %172 = vmatpush.bf16.msra.mxu0 %v150
    %173 = vmatpush.bf16.msra.mxu0 %v149
    %174 = vmatpush.bf16.msra.mxu0 %v148
    %175 = vmatpush.bf16.msra.mxu0 %v147
    %176 = vmatmul.bf16.gmra.mxu0 %v157
    %v177 = vpop.f32.mrf.mxu0
    %v178 = vadd.f32 %v129, %v177
    %v179 = vpop.f32.mrf.mxu0
    %v180 = vadd.f32 %v129, %v179
    %181 = vmatmul.bf16.gmra.mxu0 %v160
    %v182 = vpop.f32.mrf.mxu0
    %v183 = vadd.f32 %v129, %v182
    %v184 = vpop.f32.mrf.mxu0
    %v185 = vadd.f32 %v129, %v184
    %186 = vmatmul.bf16.gmra.mxu0 %v163
    %v187 = vpop.f32.mrf.mxu0
    %v188 = vadd.f32 %v129, %v187
    %v189 = vpop.f32.mrf.mxu0
    %v190 = vadd.f32 %v129, %v189
    %191 = vmatmul.bf16.gmra.mxu0 %v166
    %v192 = vpop.f32.mrf.mxu0
    %v193 = vadd.f32 %v129, %v192
    %v194 = vpop.f32.mrf.mxu0
    %v195 = vadd.f32 %v129, %v194
    %196 = vdwg.mxu0
    %v197 = vld [vmem:[%s2] sm:$0xf]
    %v198 = vld [vmem:[%s2 + $0x4] sm:$0xf]
    %v199 = vld [vmem:[%s2 + $0x8] sm:$0xf]
    %v200 = vld [vmem:[%s2 + $0xc] sm:$0xf]
    %v201 = vld [vmem:[%s2 + $0x10] sm:$0xf]
    %v202 = vld [vmem:[%s2 + $0x14] sm:$0xf]
    %v203 = vld [vmem:[%s2 + $0x18] sm:$0xf]
    %v204 = vld [vmem:[%s2 + $0x1c] sm:$0xf]
    %v205 = vld [vmem:[%s2 + $0x20] sm:$0xf]
    %v206 = vld [vmem:[%s2 + $0x24] sm:$0xf]
    %v207 = vld [vmem:[%s2 + $0x28] sm:$0xf]
    %v208 = vld [vmem:[%s2 + $0x2c] sm:$0xf]
    %v209 = vld [vmem:[%s2 + $0x30] sm:$0xf]
    %v210 = vld [vmem:[%s2 + $0x34] sm:$0xf]
    %v211 = vld [vmem:[%s2 + $0x38] sm:$0xf]
    %v212 = vld [vmem:[%s2 + $0x3c] sm:$0xf]
    %v229 = vunpack.c.l.b16 %v197
    %v230 = vunpack.c.l.b16 %v198
    %v231 = vunpack.c.l.b16 %v199
    %v232 = vunpack.c.l.b16 %v200
    %v233 = vunpack.c.l.b16 %v201
    %v234 = vunpack.c.l.b16 %v202
    %v235 = vunpack.c.l.b16 %v203
    %v236 = vunpack.c.l.b16 %v204
    %v237 = vunpack.c.l.b16 %v205
    %v238 = vunpack.c.l.b16 %v206
    %v239 = vunpack.c.l.b16 %v207
    %v240 = vunpack.c.l.b16 %v208
    %v241 = vunpack.c.l.b16 %v209
    %v242 = vunpack.c.l.b16 %v210
    %v243 = vunpack.c.l.b16 %v211
    %v244 = vunpack.c.l.b16 %v212
    %v245 = vpack.c.b16 %v230, %v229
    %v246 = vpack.c.b16 %v232, %v231
    %v247 = vpack.c.b16 %v234, %v233
    %v248 = vpack.c.b16 %v236, %v235
    %v249 = vpack.c.b16 %v238, %v237
    %v250 = vpack.c.b16 %v240, %v239
    %v251 = vpack.c.b16 %v242, %v241
    %v252 = vpack.c.b16 %v244, %v243
    %261 = vmatpush.bf16.msra.mxu0 %v252
    %262 = vmatpush.bf16.msra.mxu0 %v251
    %263 = vmatpush.bf16.msra.mxu0 %v250
    %264 = vmatpush.bf16.msra.mxu0 %v249
    %265 = vmatpush.bf16.msra.mxu0 %v248
    %266 = vmatpush.bf16.msra.mxu0 %v247
    %267 = vmatpush.bf16.msra.mxu0 %v246
    %268 = vmatpush.bf16.msra.mxu0 %v245
    %269 = vmatmul.bf16.gmra.mxu0 0
    %v270 = vpop.f32.mrf.mxu0
    %v271 = vadd.f32 0.0, %v270
    %v272 = vpop.f32.mrf.mxu0
    %273 = vdwg.mxu0
    %v274 = vadd.f32 %v178, %v271
    %v275 = vxor.u32 %v274, 2147483648
    %v276 = vmul.f32 %v275, 1.442695
    %v277 = vpow.pop %v276
    %v278 = vadd.f32 %v277, 1.0
    %v279 = vrcp.pop %v278
    %v280 = vmul.f32 %v278, %v279
    %v281 = vsub.f32 1.0, %v280
    %v282 = vmul.f32 %v279, %v281
    %v283 = vadd.f32 %v279, %v282
    %vm284 = vweird.f32 %v278
    %vm285 = vweird.f32 %v279
    %vm286 = vmor %vm284, %vm285
    %v287 = vsel %vm286, %v279, %v283
    %v288 = vand.u32 2147483647, %v278
    %vm289 = vcmp.eq.f32.partialorder %v288, 8.507059e+37
    %v290 = vand.u32 %v278, 2147483648
    %v291 = vor.u32 1.1754944e-38, %v290
    %v292 = vsel %vm289, %v291, %v287
    %v293 = vmul.f32 1.0, %v292
    %v294 = vtanh.pop %v274
    %295 = vrot.lane.b32.xlu0 %v293, 96
    %v296 = vpop.permute.xlu0 %295
    %297 = vrot.lane.b32.xlu0 %v294, 64
    %v298 = vpop.permute.xlu0 %297
    %299 = vrot.lane.b32.xlu0 %v293, 32
    %v300 = vpop.permute.xlu0 %299
    %v301 = vmul.f32 %v296, 0.0
    %v302 = vmul.f32 %v293, %v298
    %v303 = vadd.f32 %v301, %v302
    %v304 = vtanh.pop %v303
    %v305 = vmul.f32 %v300, %v304
    %v306 = vpack.c.bf16 %v305, %v305
    %307 = vmatpush.bf16.msra.mxu0 %v252
    %308 = vmatpush.bf16.msra.mxu0 %v251
    %309 = vmatpush.bf16.msra.mxu0 %v250
    %310 = vmatpush.bf16.msra.mxu0 %v249
    %311 = vmatpush.bf16.msra.mxu0 %v248
    %312 = vmatpush.bf16.msra.mxu0 %v247
    %313 = vmatpush.bf16.msra.mxu0 %v246
    %314 = vmatpush.bf16.msra.mxu0 %v245
    %315 = vmatmul.bf16.gmra.mxu0 %v306
    %v316 = vpop.f32.mrf.mxu0
    %v317 = vadd.f32 0.0, %v316
    %v318 = vpop.f32.mrf.mxu0
    %319 = vdwg.mxu0
    %v320 = vadd.f32 %v180, %v317
    %v321 = vxor.u32 %v320, 2147483648
    %v322 = vmul.f32 %v321, 1.442695
    %v323 = vpow.pop %v322
    %v324 = vadd.f32 %v323, 1.0
    %v325 = vrcp.pop %v324
    %v326 = vmul.f32 %v324, %v325
    %v327 = vsub.f32 1.0, %v326
    %v328 = vmul.f32 %v325, %v327
    %v329 = vadd.f32 %v325, %v328
    %vm330 = vweird.f32 %v324
    %vm331 = vweird.f32 %v325
    %vm332 = vmor %vm330, %vm331
    %v333 = vsel %vm332, %v325, %v329
    %v334 = vand.u32 2147483647, %v324
    %vm335 = vcmp.eq.f32.partialorder %v334, 8.507059e+37
    %v336 = vand.u32 %v324, 2147483648
    %v337 = vor.u32 1.1754944e-38, %v336
    %v338 = vsel %vm335, %v337, %v333
    %v339 = vmul.f32 1.0, %v338
    %v340 = vtanh.pop %v320
    %341 = vrot.lane.b32.xlu0 %v339, 96
    %v342 = vpop.permute.xlu0 %341
    %343 = vrot.lane.b32.xlu0 %v340, 64
    %v344 = vpop.permute.xlu0 %343
    %345 = vrot.lane.b32.xlu0 %v339, 32
    %v346 = vpop.permute.xlu0 %345
    %v347 = vmul.f32 %v342, %v303
    %v348 = vmul.f32 %v339, %v344
    %v349 = vadd.f32 %v347, %v348
    %v350 = vtanh.pop %v349
    %v351 = vmul.f32 %v346, %v350
    %v352 = vpack.c.bf16 %v351, %v351
    %353 = vmatpush.bf16.msra.mxu0 %v252
    %354 = vmatpush.bf16.msra.mxu0 %v251
    %355 = vmatpush.bf16.msra.mxu0 %v250
    %356 = vmatpush.bf16.msra.mxu0 %v249
    %357 = vmatpush.bf16.msra.mxu0 %v248
    %358 = vmatpush.bf16.msra.mxu0 %v247
    %359 = vmatpush.bf16.msra.mxu0 %v246
    %360 = vmatpush.bf16.msra.mxu0 %v245
    %361 = vmatmul.bf16.gmra.mxu0 %v352
    %v362 = vpop.f32.mrf.mxu0
    %v363 = vadd.f32 0.0, %v362
    %v364 = vpop.f32.mrf.mxu0
    %365 = vdwg.mxu0
    %v366 = vadd.f32 %v183, %v363
    %v367 = vxor.u32 %v366, 2147483648
    %v368 = vmul.f32 %v367, 1.442695
    %v369 = vpow.pop %v368
    %v370 = vadd.f32 %v369, 1.0
    %v371 = vrcp.pop %v370
    %v372 = vmul.f32 %v370, %v371
    %v373 = vsub.f32 1.0, %v372
    %v374 = vmul.f32 %v371, %v373
    %v375 = vadd.f32 %v371, %v374
    %vm376 = vweird.f32 %v370
    %vm377 = vweird.f32 %v371
    %vm378 = vmor %vm376, %vm377
    %v379 = vsel %vm378, %v371, %v375
    %v380 = vand.u32 2147483647, %v370
    %vm381 = vcmp.eq.f32.partialorder %v380, 8.507059e+37
    %v382 = vand.u32 %v370, 2147483648
    %v383 = vor.u32 1.1754944e-38, %v382
    %v384 = vsel %vm381, %v383, %v379
    %v385 = vmul.f32 1.0, %v384
    %v386 = vtanh.pop %v366
    %387 = vrot.lane.b32.xlu0 %v385, 96
    %v388 = vpop.permute.xlu0 %387
    %389 = vrot.lane.b32.xlu0 %v386, 64
    %v390 = vpop.permute.xlu0 %389
    %391 = vrot.lane.b32.xlu0 %v385, 32
    %v392 = vpop.permute.xlu0 %391
    %v393 = vmul.f32 %v388, %v349
    %v394 = vmul.f32 %v385, %v390
    %v395 = vadd.f32 %v393, %v394
    %v396 = vtanh.pop %v395
    %v397 = vmul.f32 %v392, %v396
    %v398 = vpack.c.bf16 %v397, %v397
    %399 = vmatpush.bf16.msra.mxu0 %v252
    %400 = vmatpush.bf16.msra.mxu0 %v251
    %401 = vmatpush.bf16.msra.mxu0 %v250
    %402 = vmatpush.bf16.msra.mxu0 %v249
    %403 = vmatpush.bf16.msra.mxu0 %v248
    %404 = vmatpush.bf16.msra.mxu0 %v247
    %405 = vmatpush.bf16.msra.mxu0 %v246
    %406 = vmatpush.bf16.msra.mxu0 %v245
    %407 = vmatmul.bf16.gmra.mxu0 %v398
    %v408 = vpop.f32.mrf.mxu0
    %v409 = vadd.f32 0.0, %v408
    %v410 = vpop.f32.mrf.mxu0
    %411 = vdwg.mxu0
    %v412 = vadd.f32 %v185, %v409
    %v413 = vxor.u32 %v412, 2147483648
    %v414 = vmul.f32 %v413, 1.442695
    %v415 = vpow.pop %v414
    %v416 = vadd.f32 %v415, 1.0
    %v417 = vrcp.pop %v416
    %v418 = vmul.f32 %v416, %v417
    %v419 = vsub.f32 1.0, %v418
    %v420 = vmul.f32 %v417, %v419
    %v421 = vadd.f32 %v417, %v420
    %vm422 = vweird.f32 %v416
    %vm423 = vweird.f32 %v417
    %vm424 = vmor %vm422, %vm423
    %v425 = vsel %vm424, %v417, %v421
    %v426 = vand.u32 2147483647, %v416
    %vm427 = vcmp.eq.f32.partialorder %v426, 8.507059e+37
    %v428 = vand.u32 %v416, 2147483648
    %v429 = vor.u32 1.1754944e-38, %v428
    %v430 = vsel %vm427, %v429, %v425
    %v431 = vmul.f32 1.0, %v430
    %v432 = vtanh.pop %v412
    %433 = vrot.lane.b32.xlu0 %v431, 96
    %v434 = vpop.permute.xlu0 %433
    %435 = vrot.lane.b32.xlu0 %v432, 64
    %v436 = vpop.permute.xlu0 %435
    %437 = vrot.lane.b32.xlu0 %v431, 32
    %v438 = vpop.permute.xlu0 %437
    %v439 = vmul.f32 %v434, %v395
    %v440 = vmul.f32 %v431, %v436
    %v441 = vadd.f32 %v439, %v440
    %v442 = vtanh.pop %v441
    %v443 = vmul.f32 %v438, %v442
    %v444 = vpack.c.bf16 %v443, %v443
    %445 = vmatpush.bf16.msra.mxu0 %v252
    %446 = vmatpush.bf16.msra.mxu0 %v251
    %447 = vmatpush.bf16.msra.mxu0 %v250
    %448 = vmatpush.bf16.msra.mxu0 %v249
    %449 = vmatpush.bf16.msra.mxu0 %v248
    %450 = vmatpush.bf16.msra.mxu0 %v247
    %451 = vmatpush.bf16.msra.mxu0 %v246
    %452 = vmatpush.bf16.msra.mxu0 %v245
    %453 = vmatmul.bf16.gmra.mxu0 %v444
    %v454 = vpop.f32.mrf.mxu0
    %v455 = vadd.f32 0.0, %v454
    %v456 = vpop.f32.mrf.mxu0
    %457 = vdwg.mxu0
    %v458 = vadd.f32 %v188, %v455
    %v459 = vxor.u32 %v458, 2147483648
    %v460 = vmul.f32 %v459, 1.442695
    %v461 = vpow.pop %v460
    %v462 = vadd.f32 %v461, 1.0
    %v463 = vrcp.pop %v462
    %v464 = vmul.f32 %v462, %v463
    %v465 = vsub.f32 1.0, %v464
    %v466 = vmul.f32 %v463, %v465
    %v467 = vadd.f32 %v463, %v466
    %vm468 = vweird.f32 %v462
    %vm469 = vweird.f32 %v463
    %vm470 = vmor %vm468, %vm469
    %v471 = vsel %vm470, %v463, %v467
    %v472 = vand.u32 2147483647, %v462
    %vm473 = vcmp.eq.f32.partialorder %v472, 8.507059e+37
    %v474 = vand.u32 %v462, 2147483648
    %v475 = vor.u32 1.1754944e-38, %v474
    %v476 = vsel %vm473, %v475, %v471
    %v477 = vmul.f32 1.0, %v476
    %v478 = vtanh.pop %v458
    %479 = vrot.lane.b32.xlu0 %v477, 96
    %v480 = vpop.permute.xlu0 %479
    %481 = vrot.lane.b32.xlu0 %v478, 64
    %v482 = vpop.permute.xlu0 %481
    %483 = vrot.lane.b32.xlu0 %v477, 32
    %v484 = vpop.permute.xlu0 %483
    %v485 = vmul.f32 %v480, %v441
    %v486 = vmul.f32 %v477, %v482
    %v487 = vadd.f32 %v485, %v486
    %v488 = vtanh.pop %v487
    %v489 = vmul.f32 %v484, %v488
    %v490 = vpack.c.bf16 %v489, %v489
    %491 = vmatpush.bf16.msra.mxu0 %v252
    %492 = vmatpush.bf16.msra.mxu0 %v251
    %493 = vmatpush.bf16.msra.mxu0 %v250
    %494 = vmatpush.bf16.msra.mxu0 %v249
    %495 = vmatpush.bf16.msra.mxu0 %v248
    %496 = vmatpush.bf16.msra.mxu0 %v247
    %497 = vmatpush.bf16.msra.mxu0 %v246
    %498 = vmatpush.bf16.msra.mxu0 %v245
    %499 = vmatmul.bf16.gmra.mxu0 %v490
    %v500 = vpop.f32.mrf.mxu0
    %v501 = vadd.f32 0.0, %v500
    %v502 = vpop.f32.mrf.mxu0
    %503 = vdwg.mxu0
    %v504 = vadd.f32 %v190, %v501
    %v505 = vxor.u32 %v504, 2147483648
    %v506 = vmul.f32 %v505, 1.442695
    %v507 = vpow.pop %v506
    %v508 = vadd.f32 %v507, 1.0
    %v509 = vrcp.pop %v508
    %v510 = vmul.f32 %v508, %v509
    %v511 = vsub.f32 1.0, %v510
    %v512 = vmul.f32 %v509, %v511
    %v513 = vadd.f32 %v509, %v512
    %vm514 = vweird.f32 %v508
    %vm515 = vweird.f32 %v509
    %vm516 = vmor %vm514, %vm515
    %v517 = vsel %vm516, %v509, %v513
    %v518 = vand.u32 2147483647, %v508
    %vm519 = vcmp.eq.f32.partialorder %v518, 8.507059e+37
    %v520 = vand.u32 %v508, 2147483648
    %v521 = vor.u32 1.1754944e-38, %v520
    %v522 = vsel %vm519, %v521, %v517
    %v523 = vmul.f32 1.0, %v522
    %v524 = vtanh.pop %v504
    %525 = vrot.lane.b32.xlu0 %v523, 96
    %v526 = vpop.permute.xlu0 %525
    %527 = vrot.lane.b32.xlu0 %v524, 64
    %v528 = vpop.permute.xlu0 %527
    %529 = vrot.lane.b32.xlu0 %v523, 32
    %v530 = vpop.permute.xlu0 %529
    %v531 = vmul.f32 %v526, %v487
    %v532 = vmul.f32 %v523, %v528
    %v533 = vadd.f32 %v531, %v532
    %v534 = vtanh.pop %v533
    %v535 = vmul.f32 %v530, %v534
    %v536 = vpack.c.bf16 %v535, %v535
    %537 = vmatpush.bf16.msra.mxu0 %v252
    %538 = vmatpush.bf16.msra.mxu0 %v251
    %539 = vmatpush.bf16.msra.mxu0 %v250
    %540 = vmatpush.bf16.msra.mxu0 %v249
    %541 = vmatpush.bf16.msra.mxu0 %v248
    %542 = vmatpush.bf16.msra.mxu0 %v247
    %543 = vmatpush.bf16.msra.mxu0 %v246
    %544 = vmatpush.bf16.msra.mxu0 %v245
    %545 = vmatmul.bf16.gmra.mxu0 %v536
    %v546 = vpop.f32.mrf.mxu0
    %v547 = vadd.f32 0.0, %v546
    %v548 = vpop.f32.mrf.mxu0
    %549 = vdwg.mxu0
    %v550 = vadd.f32 %v193, %v547
    %v551 = vxor.u32 %v550, 2147483648
    %v552 = vmul.f32 %v551, 1.442695
    %v553 = vpow.pop %v552
    %v554 = vadd.f32 %v553, 1.0
    %v555 = vrcp.pop %v554
    %v556 = vmul.f32 %v554, %v555
    %v557 = vsub.f32 1.0, %v556
    %v558 = vmul.f32 %v555, %v557
    %v559 = vadd.f32 %v555, %v558
    %vm560 = vweird.f32 %v554
    %vm561 = vweird.f32 %v555
    %vm562 = vmor %vm560, %vm561
    %v563 = vsel %vm562, %v555, %v559
    %v564 = vand.u32 2147483647, %v554
    %vm565 = vcmp.eq.f32.partialorder %v564, 8.507059e+37
    %v566 = vand.u32 %v554, 2147483648
    %v567 = vor.u32 1.1754944e-38, %v566
    %v568 = vsel %vm565, %v567, %v563
    %v569 = vmul.f32 1.0, %v568
    %v570 = vtanh.pop %v550
    %571 = vrot.lane.b32.xlu0 %v569, 96
    %v572 = vpop.permute.xlu0 %571
    %573 = vrot.lane.b32.xlu0 %v570, 64
    %v574 = vpop.permute.xlu0 %573
    %575 = vrot.lane.b32.xlu0 %v569, 32
    %v576 = vpop.permute.xlu0 %575
    %v577 = vmul.f32 %v572, %v533
    %v578 = vmul.f32 %v569, %v574
    %v579 = vadd.f32 %v577, %v578
    %v580 = vtanh.pop %v579
    %v581 = vmul.f32 %v576, %v580
    %v582 = vpack.c.bf16 %v581, %v581
    %583 = vmatpush.bf16.msra.mxu0 %v252
    %584 = vmatpush.bf16.msra.mxu0 %v251
    %585 = vmatpush.bf16.msra.mxu0 %v250
    %586 = vmatpush.bf16.msra.mxu0 %v249
    %587 = vmatpush.bf16.msra.mxu0 %v248
    %588 = vmatpush.bf16.msra.mxu0 %v247
    %589 = vmatpush.bf16.msra.mxu0 %v246
    %590 = vmatpush.bf16.msra.mxu0 %v245
    %591 = vmatmul.bf16.gmra.mxu0 %v582
    %v592 = vpop.f32.mrf.mxu0
    %v593 = vadd.f32 0.0, %v592
    %v594 = vpop.f32.mrf.mxu0
    %595 = vdwg.mxu0
    %v596 = vadd.f32 %v195, %v593
    %v597 = vxor.u32 %v596, 2147483648
    %v598 = vmul.f32 %v597, 1.442695
    %v599 = vpow.pop %v598
    %v600 = vadd.f32 %v599, 1.0
    %v601 = vrcp.pop %v600
    %v602 = vmul.f32 %v600, %v601
    %v603 = vsub.f32 1.0, %v602
    %v604 = vmul.f32 %v601, %v603
    %v605 = vadd.f32 %v601, %v604
    %vm606 = vweird.f32 %v600
    %vm607 = vweird.f32 %v601
    %vm608 = vmor %vm606, %vm607
    %v609 = vsel %vm608, %v601, %v605
    %v610 = vand.u32 2147483647, %v600
    %vm611 = vcmp.eq.f32.partialorder %v610, 8.507059e+37
    %v612 = vand.u32 %v600, 2147483648
    %v613 = vor.u32 1.1754944e-38, %v612
    %v614 = vsel %vm611, %v613, %v609
    %v615 = vmul.f32 1.0, %v614
    %v616 = vtanh.pop %v596
    %617 = vrot.lane.b32.xlu0 %v615, 96
    %v618 = vpop.permute.xlu0 %617
    %619 = vrot.lane.b32.xlu0 %v616, 64
    %v620 = vpop.permute.xlu0 %619
    %621 = vrot.lane.b32.xlu0 %v615, 32
    %v622 = vpop.permute.xlu0 %621
    %v623 = vmul.f32 %v618, %v579
    %v624 = vmul.f32 %v615, %v620
    %v625 = vadd.f32 %v623, %v624
    %v626 = vtanh.pop %v625
    %v627 = vmul.f32 %v622, %v626
    %v628 = vmax.f32 %v627, 0.0
    %v629 = vpack.c.bf16 %v628, %v628
    %v630 = vld [vmem:[#allocation5] sm:$0xf]
    %v631 = vld [vmem:[#allocation5 + $0x4] sm:$0xf]
    %v632 = vld [vmem:[#allocation5 + $0x8] sm:$0xf]
    %v633 = vld [vmem:[#allocation5 + $0xc] sm:$0xf]
    %v634 = vld [vmem:[#allocation5 + $0x10] sm:$0xf]
    %v635 = vld [vmem:[#allocation5 + $0x14] sm:$0xf]
    %v636 = vld [vmem:[#allocation5 + $0x18] sm:$0xf]
    %v637 = vld [vmem:[#allocation5 + $0x1c] sm:$0xf]
    %v638 = vld [vmem:[#allocation5 + $0x20] sm:$0xf]
    %v639 = vld [vmem:[#allocation5 + $0x24] sm:$0xf]
    %v640 = vld [vmem:[#allocation5 + $0x28] sm:$0xf]
    %v641 = vld [vmem:[#allocation5 + $0x2c] sm:$0xf]
    %v642 = vld [vmem:[#allocation5 + $0x30] sm:$0xf]
    %v643 = vld [vmem:[#allocation5 + $0x34] sm:$0xf]
    %v644 = vld [vmem:[#allocation5 + $0x38] sm:$0xf]
    %v645 = vld [vmem:[#allocation5 + $0x3c] sm:$0xf]
    %v646 = vld [vmem:[%s5] sm:$0x1]
    %v648 = vperm.slane %v646, 0
    %v666 = vunpack.c.l.b16 %v630
    %v667 = vunpack.c.l.b16 %v631
    %v668 = vunpack.c.l.b16 %v632
    %v669 = vunpack.c.l.b16 %v633
    %v670 = vunpack.c.l.b16 %v634
    %v671 = vunpack.c.l.b16 %v635
    %v672 = vunpack.c.l.b16 %v636
    %v673 = vunpack.c.l.b16 %v637
    %v674 = vunpack.c.l.b16 %v638
    %v675 = vunpack.c.l.b16 %v639
    %v676 = vunpack.c.l.b16 %v640
    %v677 = vunpack.c.l.b16 %v641
    %v678 = vunpack.c.l.b16 %v642
    %v679 = vunpack.c.l.b16 %v643
    %v680 = vunpack.c.l.b16 %v644
    %v681 = vunpack.c.l.b16 %v645
    %v682 = vpack.c.b16 %v667, %v666
    %v683 = vpack.c.b16 %v669, %v668
    %v684 = vpack.c.b16 %v671, %v670
    %v685 = vpack.c.b16 %v673, %v672
    %v686 = vpack.c.b16 %v675, %v674
    %v687 = vpack.c.b16 %v677, %v676
    %v688 = vpack.c.b16 %v679, %v678
    %v689 = vpack.c.b16 %v681, %v680
    %698 = vmatpush.bf16.msra.mxu0 %v689
    %699 = vmatpush.bf16.msra.mxu0 %v688
    %700 = vmatpush.bf16.msra.mxu0 %v687
    %701 = vmatpush.bf16.msra.mxu0 %v686
    %702 = vmatpush.bf16.msra.mxu0 %v685
    %703 = vmatpush.bf16.msra.mxu0 %v684
    %704 = vmatpush.bf16.msra.mxu0 %v683
    %705 = vmatpush.bf16.msra.mxu0 %v682
    %706 = vmatmul.bf16.gmra.mxu0 %v629
    %v707 = vpop.f32.mrf.mxu0
    %v708 = vadd.f32 %v648, %v707
    %v709 = vpop.f32.mrf.mxu0
    %710 = vdwg.mxu0
    %711 = vst [vmem:[#allocation7] sm:$0xff] %v708
    // Predicated region
    $region34: #{chatbot_forward.1} parent=1 // pred_check
      _
    $region35: #{chatbot_forward.1} parent=1 // pred_check_branch
      %713 = sbr.rel (0) target = $region37
    $region36: #{chatbot_forward.1} parent=1 // pred_region
      %715 = vsyncadd [#allocation4], 0
      %s717 = sshll.u32 [#allocation7], 4
      %s718 = int_to_ptr.vmem [resolvable:$true] %s717
      %s719 = sshll.u32 %s6, 4
      %s720 = int_to_ptr.hbm [resolvable:$true] %s719
      %722 = dma.vmem_to_hbm [thread:$0]  %s718, 128, %s720, [#allocation4]
    $region37: #{chatbot_forward.1} parent=1 // pred_fallthru
      _
    // Predicated region
    $region38: #{chatbot_forward.1} parent=1 // pred_check
      _
    $region39: #{chatbot_forward.1} parent=1 // pred_check_branch
      %724 = sbr.rel (0) target = $region41
    $region40: #{chatbot_forward.1} parent=1 // pred_region
      %726 = dma.done [#allocation4], 128
    $region41: #{chatbot_forward.1} parent=1 // pred_fallthru
      _
    %727 = vsyncpa [#allocation3], 1
    %728 = vsyncpa [#allocation6], 1
    %729 = vsyncpa [#allocation4], 1

</llo_original>
